<compile_context>
chip_gen: v6e
topology: v6e:2x2x1
jax: 0.10.0
libtpu: 0.0.40
codegen_flags: <defaults>
</compile_context>

<pallas_src>
import jax
import jax.numpy as jnp
from jax.experimental import pallas as pl
from jax.experimental.pallas import tpu as pltpu


def _subspace_kernel(z_ref, u_ref, l_ref, mu_ref, o_ref):
    # Elementwise scale (VPU) + tiny-K matmul (MXU, hidden under DMA) + bias.
    scaled = z_ref[...] * l_ref[...]              # (tb, n_basis) * (1, n_basis)
    acc = jnp.dot(scaled, u_ref[...],             # (tb, td), f32 accumulation
                  preferred_element_type=jnp.float32)
    o_ref[...] = (acc + mu_ref[...]).astype(o_ref.dtype)


def _choose_tiles(B, dim, out_itemsize, tb, td):
    """Pick (tb, td): tb multiple of 8 (or full B), td multiple of 128 (or full
    dim), with td byte-targeted so the output tile is ~2 MiB, and at least two
    grid programs along the leading dim axis whenever dim allows."""
    # Batch tile.
    if tb is None:
        tb = 256
    if B <= tb:
        tb = B                                   # full extent: always legal
    else:
        tb = max(8, (tb // 8) * 8)

    # Dim tile: byte-targeted, lane-dense.
    if td is None:
        target_bytes = 2 << 20                   # ~2 MiB output tile
        td = (target_bytes // max(tb * out_itemsize, 1)) // 128 * 128
        td = int(min(max(td, 128), 4096))
    if dim <= td:
        td = dim                                 # full extent: always legal
    else:
        td = max(128, (td // 128) * 128)

    # v7x megacore: avoid a (1, 1) grid when the dim axis can be split.
    if pl.cdiv(dim, td) * pl.cdiv(B, tb) == 1 and dim >= 256:
        td = pl.cdiv(pl.cdiv(dim, 2), 128) * 128

    return tb, td


def subspace_layer(z, U, L, mu, *, tb=None, td=None):
    """out = (L * z) @ U + mu, tiled over (dim, batch) with pipelined DMAs."""
    B, n_basis = z.shape
    n_basis_u, dim = U.shape
    assert n_basis == n_basis_u
    assert L.shape == (n_basis,)
    assert mu.shape == (dim,)

    # 2-D rows so L / mu broadcast cleanly in VMEM and tile on the lane axis.
    l_row = L.reshape(1, n_basis)
    mu_row = mu.reshape(1, dim)

    out_dtype = z.dtype
    out_itemsize = jnp.dtype(out_dtype).itemsize

    tb, td = _choose_tiles(B, dim, out_itemsize, tb, td)

    grid_d = pl.cdiv(dim, td)                    # outer: dim tiles (parallel)
    grid_b = pl.cdiv(B, tb)                      # inner: batch tiles (U resident)
    grid = (grid_d, grid_b)

    # Double-buffered per-step VMEM working set + headroom, clamped chip-aware
    # to at most half of physical VMEM (64 MiB on v7x, 128 MiB on v5e/v6e).
    block_bytes = 2 * (
        tb * n_basis * z.dtype.itemsize
        + n_basis * td * U.dtype.itemsize
        + n_basis * l_row.dtype.itemsize
        + td * mu_row.dtype.itemsize
        + tb * td * out_itemsize
    )
    try:
        vmem_cap = int(pltpu.get_tpu_info().vmem_capacity_bytes)
    except Exception:
        vmem_cap = 64 << 20                      # conservative (v7x) fallback
    vmem_limit = int(min(max(4 * block_bytes, 16 << 20), vmem_cap // 2))

    # HBM traffic: U/mu/L are read once (resident across the inner batch
    # sweep); z is re-read once per outer dim tile; out is written once.
    cost = pl.CostEstimate(
        flops=2 * B * n_basis * dim,
        transcendentals=0,
        bytes_accessed=(
            grid_d * z.size * z.dtype.itemsize
            + U.size * U.dtype.itemsize
            + L.size * L.dtype.itemsize
            + mu.size * mu.dtype.itemsize
            + B * dim * out_itemsize
        ),
    )

    # index_maps receive grid indices in grid order: (j = dim tile, i = batch
    # tile).  U/mu depend only on j -> stay resident across the inner sweep.
    return pl.pallas_call(
        _subspace_kernel,
        out_shape=jax.ShapeDtypeStruct((B, dim), out_dtype),
        grid=grid,
        in_specs=[
            pl.BlockSpec((tb, n_basis), lambda j, i: (i, 0)),   # z
            pl.BlockSpec((n_basis, td), lambda j, i: (0, j)),   # U (resident)
            pl.BlockSpec((1, n_basis), lambda j, i: (0, 0)),    # L (resident)
            pl.BlockSpec((1, td), lambda j, i: (0, j)),         # mu (resident)
        ],
        out_specs=pl.BlockSpec((tb, td), lambda j, i: (i, j)),
        compiler_params=pltpu.CompilerParams(
            dimension_semantics=("parallel", "parallel"),
            vmem_limit_bytes=vmem_limit,
        ),
        cost_estimate=cost,
    )(z, U, l_row, mu_row)


def init_subspace_params(key, dim, n_basis, dtype=jnp.float32):
    """Deterministic parameter init mirroring the PyTorch __init__."""
    # U: orthogonal rows, shape (n_basis, dim)  (nn.init.orthogonal_)
    g = jax.random.normal(key, (dim, n_basis), dtype=jnp.float32)
    q, _ = jnp.linalg.qr(g)                  # (dim, n_basis), orthonormal cols
    U = q.T.astype(dtype)                    # (n_basis, dim), orthonormal rows
    # L: [3*n_basis, 3*(n_basis-1), ..., 3]
    L = jnp.asarray([3.0 * i for i in range(n_basis, 0, -1)], dtype=dtype)
    # mu: zeros(dim)
    mu = jnp.zeros((dim,), dtype=dtype)
    return U, L, mu


if __name__ == "__main__":
    key = jax.random.PRNGKey(0)
    k_u, k_z = jax.random.split(key)

    # 1) Small demo shapes consistent with a SubspaceLayer in EigenGAN.
    batch, n_basis, dim = 8, 6, 256
    U, L, mu = init_subspace_params(k_u, dim, n_basis)
    z = jax.random.normal(k_z, (batch, n_basis), dtype=jnp.float32)
    out = jax.block_until_ready(subspace_layer(z, U, L, mu))
    ref = (L * z) @ U + mu
    assert out.shape == (batch, dim)
    assert jnp.allclose(out, ref, atol=1e-5, rtol=1e-5)

    # 2) Larger shape: exercises the (dim, batch) grid with U resident in VMEM.
    batch2, n_basis2, dim2 = 64, 8, 2048
    U2, L2, mu2 = init_subspace_params(k_u, dim2, n_basis2)
    z2 = jax.random.normal(k_z, (batch2, n_basis2), dtype=jnp.float32)
    out2 = jax.block_until_ready(subspace_layer(z2, U2, L2, mu2))
    ref2 = (L2 * z2) @ U2 + mu2
    assert jnp.allclose(out2, ref2, atol=1e-4, rtol=1e-4)

    # 3) bf16 end-to-end (halves the dominant U/out HBM bytes); f32 accumulate.
    batch3, n_basis3, dim3 = 16, 8, 512
    U3, L3, mu3 = init_subspace_params(k_u, dim3, n_basis3, dtype=jnp.bfloat16)
    z3 = jax.random.normal(k_z, (batch3, n_basis3), dtype=jnp.bfloat16)
    out3 = jax.block_until_ready(subspace_layer(z3, U3, L3, mu3))
    ref3 = ((L3.astype(jnp.float32) * z3.astype(jnp.float32))
            @ U3.astype(jnp.float32) + mu3.astype(jnp.float32))
    assert out3.dtype == jnp.bfloat16
    assert jnp.allclose(out3.astype(jnp.float32), ref3, atol=2e-2, rtol=2e-2)

    # 4) Ragged shapes: cdiv grid + masked last tile (no full-extent fallback).
    batch4, n_basis4, dim4 = 20, 6, 384
    U4, L4, mu4 = init_subspace_params(k_u, dim4, n_basis4)
    z4 = jax.random.normal(k_z, (batch4, n_basis4), dtype=jnp.float32)
    out4 = jax.block_until_ready(subspace_layer(z4, U4, L4, mu4, td=256))
    ref4 = (L4 * z4) @ U4 + mu4
    assert out4.shape == (batch4, dim4)
    assert jnp.allclose(out4, ref4, atol=1e-5, rtol=1e-5)

    print("KERNEL_OK")
</pallas_src>

<mosaic_0001>
module attributes {stable_mosaic.version = 11 : i64} {
  func.func @_subspace_kernel(%arg0: i32, %arg1: i32, %arg2: memref<8x6xf32, #tpu.memory_space<vmem>>, %arg3: memref<6x128xf32, #tpu.memory_space<vmem>>, %arg4: memref<1x6xf32, #tpu.memory_space<vmem>>, %arg5: memref<1x128xf32, #tpu.memory_space<vmem>>, %arg6: memref<8x128xf32, #tpu.memory_space<vmem>>) attributes {dimension_semantics = [#tpu.dimension_semantics<parallel>, #tpu.dimension_semantics<parallel>], iteration_bounds = array<i64: 2, 1>, scalar_prefetch = 0 : i64, scratch_operands = 0 : i64, tpu.core_type = #tpu.core_type<tc>, window_params = [{transform_indices = @transform_0, window_bounds = array<i64: 8, 6>}, {transform_indices = @transform_1, window_bounds = array<i64: 6, 128>}, {pipeline_mode = #tpu.pipeline_mode<synchronous>, transform_indices = @transform_2, window_bounds = array<i64: 1, 6>}, {transform_indices = @transform_3, window_bounds = array<i64: 1, 128>}, {transform_indices = @transform_4, window_bounds = array<i64: 8, 128>}]} {
    %c0 = arith.constant 0 : index
    %c0_0 = arith.constant 0 : index
    %0 = vector.load %arg2[%c0, %c0_0] : memref<8x6xf32, #tpu.memory_space<vmem>>, vector<8x6xf32>
    %c0_1 = arith.constant 0 : index
    %c0_2 = arith.constant 0 : index
    %1 = vector.load %arg4[%c0_1, %c0_2] : memref<1x6xf32, #tpu.memory_space<vmem>>, vector<1x6xf32>
    %2 = vector.broadcast %1 : vector<1x6xf32> to vector<8x6xf32>
    %3 = arith.mulf %0, %2 : vector<8x6xf32>
    %c0_3 = arith.constant 0 : index
    %c0_4 = arith.constant 0 : index
    %4 = vector.load %arg3[%c0_3, %c0_4] : memref<6x128xf32, #tpu.memory_space<vmem>>, vector<6x128xf32>
    %cst = arith.constant dense<0.000000e+00> : vector<8x128xf32>
    %5 = tpu.matmul %3, %4, %cst {dimension_numbers = #tpu.dot_dimension_numbers<[1], [0], [0], [1], [0, 0, 1, 1], [], []>} : vector<8x6xf32>, vector<6x128xf32>, vector<8x128xf32> -> vector<8x128xf32>
    %c0_5 = arith.constant 0 : index
    %c0_6 = arith.constant 0 : index
    %6 = vector.load %arg5[%c0_5, %c0_6] : memref<1x128xf32, #tpu.memory_space<vmem>>, vector<1x128xf32>
    %7 = vector.broadcast %6 : vector<1x128xf32> to vector<8x128xf32>
    %8 = arith.addf %5, %7 : vector<8x128xf32>
    %c0_7 = arith.constant 0 : index
    %c0_8 = arith.constant 0 : index
    %9 = vector.load %arg6[%c0_7, %c0_8] : memref<8x128xf32, #tpu.memory_space<vmem>>, vector<8x128xf32>
    tpu.vector_store %arg6[%c0_7, %c0_8], %8 {strides = array<i32>} : memref<8x128xf32, #tpu.memory_space<vmem>>, vector<8x128xf32>,
    return
  }
  func.func @transform_0(%arg0: i32, %arg1: i32) -> (i32, i32) {
    %c0_i32 = arith.constant 0 : i32
    %c0_i32_0 = arith.constant 0 : i32
    return %arg1, %c0_i32 : i32, i32
  }
  func.func @transform_1(%arg0: i32, %arg1: i32) -> (i32, i32) {
    %c0_i32 = arith.constant 0 : i32
    %c0_i32_0 = arith.constant 0 : i32
    return %c0_i32, %arg0 : i32, i32
  }
  func.func @transform_2(%arg0: i32, %arg1: i32) -> (i32, i32) {
    %c0_i32 = arith.constant 0 : i32
    %c0_i32_0 = arith.constant 0 : i32
    %c0_i32_1 = arith.constant 0 : i32
    return %c0_i32, %c0_i32_0 : i32, i32
  }
  func.func @transform_3(%arg0: i32, %arg1: i32) -> (i32, i32) {
    %c0_i32 = arith.constant 0 : i32
    %c0_i32_0 = arith.constant 0 : i32
    return %c0_i32, %arg0 : i32, i32
  }
  func.func @transform_4(%arg0: i32, %arg1: i32) -> (i32, i32) {
    %c0_i32 = arith.constant 0 : i32
    return %arg1, %arg0 : i32, i32
  }
}

</mosaic_0001>

<llo_original>
// kernel: tpu_custom_call.1
$region0: #{tpu_custom_call.1}
  #allocation0 [shape = 'u32[]', space=smem, size = 0x4, offset = 0x4, fixed_abs, tag = 'smem constant byte address 0x4 - core index']
  #allocation1 [shape = 'u32[144,128]{1,0:T(1,128)}', space=vmem, size = 0x12000, scoped, tag = 'internal scratch']
  %s0 = inlined_call_operand.hbm [shape: f32[8,6], index: 0, kind: input, shape index: {}]
  %s1 = inlined_call_operand.hbm [shape: f32[6,256], index: 1, kind: input, shape index: {}]
  %s2 = inlined_call_operand.vmem [shape: f32[1,6], index: 2, kind: input, shape index: {}]
  %s3 = inlined_call_operand.vmem [shape: f32[1,256], index: 3, kind: input, shape index: {}]
  %s4 = inlined_call_operand.hbm [shape: f32[8,256], index: 4, kind: output, shape index: {}]
  %s5 = sld [smem:[#allocation0]]
  $region57: #{tpu_custom_call.1} parent=0
    _
  %s7 = ssub.s32 1, %s5
  %s8 = scalar_select 0, %s7, %s5
  $region1: #{tpu_custom_call.1} parent=0
    #allocation2 [shape = 'u8[4096]{0}', space=vmem, size = 0x1000, scoped, tag = 'input window, operand 0, single buffered']
    #allocation3 [shape = 's32[2]{0}', space=sflag, size = 0x8, scoped, tag = 'scoped memory for tpu_custom_call.1']
    #allocation4 [shape = 's32[2]{0}', space=sflag, size = 0x8, scoped, tag = 'scoped memory for tpu_custom_call.1']
    #allocation5 [shape = 'u8[8192]{0}', space=vmem, size = 0x2000, scoped, tag = 'input window, operand 1']
    #allocation6 [shape = 's32[2]{0}', space=sflag, size = 0x8, scoped, tag = 'scoped memory for tpu_custom_call.1']
    #allocation7 [shape = 'u8[8192]{0}', space=vmem, size = 0x2000, scoped, tag = 'output window, operand 0']
    %9 = vsyncpa [#allocation3], 0
    %10 = vsyncpa [#allocation6], 0
    %s11 = scalar_lea.sflag [#allocation6], 1
    %12 = vsyncpa %s11, 0
    %13 = vsyncpa [#allocation4], 0
    %s14 = scalar_lea.sflag [#allocation4], 1
    %15 = vsyncpa %s14, 0
    loop: start=0, step=1, limit=4
    $region2: #{tpu_custom_call.1} parent=1 // loop_pre_header
      _
    $region3: #{tpu_custom_call.1} parent=1 // loop_header
      %s17 = sphi 0, %s21
      %p18 = scmp.ge.s32.totalorder %s17, 4
      %s24 = sphi 0, %s36
      %s25 = sphi 0, %s32
      %s26 = sphi 0, %s24
      %s27 = sphi 0, %s25
      %s28 = sphi 0, %s26
      %s29 = sphi 0, %s27
      %s39 = sphi 0, %s41
      %s42 = sphi 0, %s39
      %s43 = sphi 0, %s42
      %s59 = sphi 0, %s43
      %s65 = sphi 0, %s67
      %s68 = sphi 0, %s65
      %s69 = sphi 0, %s68
      %s85 = sphi 0, %s69
      %s89 = sphi 0, %s89
      %s91 = sphi 0, %s89
      %s92 = sphi 0, %s91
      %s106 = sphi 0, %s92
      %s112 = sphi 0, %s114
      %s115 = sphi 0, %s112
      %s116 = sphi 0, %s115
      %s132 = sphi 0, %s116
      %s140 = sphi 0, %s142
      %s143 = sphi 0, %s140
      %s144 = sphi 0, %s143
      %s160 = sphi 0, %s144
    $region4: #{tpu_custom_call.1} parent=1 // loop_header_branch
      %20 = sbr.rel (%p18) target = $region8
    $region5: #{tpu_custom_call.1} parent=1 // loop_body
      %s22 = ssub.s32 %s17, 1
      %s23 = ssub.s32 %s17, 2
      %s30 = sadd.s32 1, %s25
      %p31 = scmp.ge.s32.totalorder %s30, 1
      %s32 = scalar_select %p31, 0, %s30
      %s33 = sadd.s32 1, %s24
      %s34 = scalar_select %p31, %s33, %s24
      %p35 = scmp.ge.s32.totalorder %s34, 2
      %s36 = scalar_select %p35, 0, %s34
      %s37 = ssub.s32 %s25, %s32
      %p38 = scmp.eq.s32.totalorder %s37, 0
      %s40 = sadd.s32 %s39, 1
      %s41 = scalar_select %p38, %s39, %s40
      %p44 = pneg %p38
      %p45 = scmp.eq.s32.totalorder %s17, 1
      %p46 = por %p44, %p45
      %p47 = scmp.ne.s32.totalorder %s39, %s42
      %p48 = scmp.eq.s32.totalorder %s17, 0
      %p49 = por %p47, %p48
      %p50 = scmp.ne.s32.totalorder %s39, %s42
      %p51 = scmp.eq.s32.totalorder %s22, 1
      %p52 = por %p50, %p51
      %p53 = scmp.ne.s32.totalorder %s42, %s43
      %p54 = scmp.eq.s32.totalorder %s22, 0
      %p55 = por %p53, %p54
      %p56 = scmp.ne.s32.totalorder %s42, %s43
      %p57 = scmp.eq.s32.totalorder %s23, 1
      %p58 = por %p56, %p57
      %p60 = scmp.ne.s32.totalorder %s43, %s59
      %p61 = scmp.eq.s32.totalorder %s23, 0
      %p62 = por %p60, %p61
      %s63 = ssub.s32 %s24, %s36
      %p64 = scmp.eq.s32.totalorder %s63, 0
      %s66 = sadd.s32 %s65, 1
      %s67 = scalar_select %p64, %s65, %s66
      %p70 = pneg %p64
      %p71 = scmp.eq.s32.totalorder %s17, 1
      %p72 = por %p70, %p71
      %p73 = scmp.ne.s32.totalorder %s65, %s68
      %p74 = scmp.eq.s32.totalorder %s17, 0
      %p75 = por %p73, %p74
      %p76 = scmp.ne.s32.totalorder %s65, %s68
      %p77 = scmp.eq.s32.totalorder %s22, 1
      %p78 = por %p76, %p77
      %p79 = scmp.ne.s32.totalorder %s68, %s69
      %p80 = scmp.eq.s32.totalorder %s22, 0
      %p81 = por %p79, %p80
      %p82 = scmp.ne.s32.totalorder %s68, %s69
      %p83 = scmp.eq.s32.totalorder %s23, 1
      %p84 = por %p82, %p83
      %p86 = scmp.ne.s32.totalorder %s69, %s85
      %p87 = scmp.eq.s32.totalorder %s23, 0
      %p88 = por %p86, %p87
      %s90 = sadd.s32 %s89, 1
      %p93 = scmp.eq.s32.totalorder %s17, 1
      %p94 = scmp.ne.s32.totalorder %s89, %s91
      %p95 = scmp.eq.s32.totalorder %s17, 0
      %p96 = por %p94, %p95
      %p97 = scmp.ne.s32.totalorder %s89, %s91
      %p98 = scmp.eq.s32.totalorder %s22, 1
      %p99 = por %p97, %p98
      %p100 = scmp.ne.s32.totalorder %s91, %s92
      %p101 = scmp.eq.s32.totalorder %s22, 0
      %p102 = por %p100, %p101
      %p103 = scmp.ne.s32.totalorder %s91, %s92
      %p104 = scmp.eq.s32.totalorder %s23, 1
      %p105 = por %p103, %p104
      %p107 = scmp.ne.s32.totalorder %s92, %s106
      %p108 = scmp.eq.s32.totalorder %s23, 0
      %p109 = por %p107, %p108
      %s110 = ssub.s32 %s24, %s36
      %p111 = scmp.eq.s32.totalorder %s110, 0
      %s113 = sadd.s32 %s112, 1
      %s114 = scalar_select %p111, %s112, %s113
      %p117 = pneg %p111
      %p118 = scmp.eq.s32.totalorder %s17, 1
      %p119 = por %p117, %p118
      %p120 = scmp.ne.s32.totalorder %s112, %s115
      %p121 = scmp.eq.s32.totalorder %s17, 0
      %p122 = por %p120, %p121
      %p123 = scmp.ne.s32.totalorder %s112, %s115
      %p124 = scmp.eq.s32.totalorder %s22, 1
      %p125 = por %p123, %p124
      %p126 = scmp.ne.s32.totalorder %s115, %s116
      %p127 = scmp.eq.s32.totalorder %s22, 0
      %p128 = por %p126, %p127
      %p129 = scmp.ne.s32.totalorder %s115, %s116
      %p130 = scmp.eq.s32.totalorder %s23, 1
      %p131 = por %p129, %p130
      %p133 = scmp.ne.s32.totalorder %s116, %s132
      %p134 = scmp.eq.s32.totalorder %s23, 0
      %p135 = por %p133, %p134
      %s136 = ssub.s32 %s25, %s32
      %s137 = ssub.s32 %s24, %s36
      %s138 = sor.u32 %s136, %s137
      %p139 = scmp.eq.s32.totalorder %s138, 0
      %s141 = sadd.s32 %s140, 1
      %s142 = scalar_select %p139, %s140, %s141
      %p145 = pneg %p139
      %p146 = scmp.eq.s32.totalorder %s17, 1
      %p147 = por %p145, %p146
      %p148 = scmp.ne.s32.totalorder %s140, %s143
      %p149 = scmp.eq.s32.totalorder %s17, 0
      %p150 = por %p148, %p149
      %p151 = scmp.ne.s32.totalorder %s140, %s143
      %p152 = scmp.eq.s32.totalorder %s22, 1
      %p153 = por %p151, %p152
      %p154 = scmp.ne.s32.totalorder %s143, %s144
      %p155 = scmp.eq.s32.totalorder %s22, 0
      %p156 = por %p154, %p155
      %p157 = scmp.ne.s32.totalorder %s143, %s144
      %p158 = scmp.eq.s32.totalorder %s23, 1
      %p159 = por %p157, %p158
      %p161 = scmp.ne.s32.totalorder %s144, %s160
      %p162 = scmp.eq.s32.totalorder %s23, 0
      %p163 = por %p161, %p162
      %p164 = scmp.le.s32.totalorder 1, %s17
      %p165 = scmp.lt.s32.totalorder %s17, 3
      %p166 = pnand %p164, %p165
      %p167 = pneg %p166
      // Predicated region
      $region9: #{tpu_custom_call.1} parent=5 // pred_check
        _
      $region10: #{tpu_custom_call.1} parent=5 // pred_check_branch
        %169 = sbr.rel (%p166) target = $region12
      $region11: #{tpu_custom_call.1} parent=5 // pred_region
        %s170 = ssub.s32 %s17, 1
        // Predicated region
        $region13: #{tpu_custom_call.1} parent=11 // pred_check
          %p171 = pneg %p55
        $region14: #{tpu_custom_call.1} parent=11 // pred_check_branch
          %173 = sbr.rel (%p171) target = $region16
        $region15: #{tpu_custom_call.1} parent=11 // pred_region
          %s175 = ssub.s32 128, 128
          %176 = vsyncadd [#allocation3], %s175
          %s177 = smul.addr %s27, 128
          %s178 = scalar_lea.hbm %s0, %s177
          %s180 = sshll.u32 [#allocation2], 4
          %s181 = int_to_ptr.vmem [resolvable:$true] %s180
          %183 = dma.hbm_to_vmem [thread:$0]  %s178, 128, %s181, [#allocation3]
        $region16: #{tpu_custom_call.1} parent=11 // pred_fallthru
          _
        // Predicated region
        $region17: #{tpu_custom_call.1} parent=11 // pred_check
          %p184 = pneg %p102
        $region18: #{tpu_custom_call.1} parent=11 // pred_check_branch
          %186 = sbr.rel (%p184) target = $region20
        $region19: #{tpu_custom_call.1} parent=11 // pred_region
          _
        $region20: #{tpu_custom_call.1} parent=11 // pred_fallthru
          _
      $region12: #{tpu_custom_call.1} parent=5 // pred_fallthru
        _
      %p187 = scmp.lt.s32.totalorder %s17, 2
      // Predicated region
      $region21: #{tpu_custom_call.1} parent=5 // pred_check
        %p188 = pneg %p187
      $region22: #{tpu_custom_call.1} parent=5 // pred_check_branch
        %190 = sbr.rel (%p188) target = $region24
      $region23: #{tpu_custom_call.1} parent=5 // pred_region
        // Predicated region
        $region25: #{tpu_custom_call.1} parent=23 // pred_check
          %p191 = pneg %p75
        $region26: #{tpu_custom_call.1} parent=23 // pred_check_branch
          %193 = sbr.rel (%p191) target = $region28
        $region27: #{tpu_custom_call.1} parent=23 // pred_region
          %s194 = sand.u32 %s65, 1
          %s195 = scalar_lea.sflag [#allocation6], %s194
          %s196 = sand.u32 %s65, 1
          %s197 = smul.addr %s196, 8
          %s198 = scalar_lea.vmem [#allocation5], %s197
          %s200 = ssub.s32 128, 128
          %201 = vsyncadd %s195, %s200
          %s202 = smul.addr %s24, 128
          %s203 = scalar_lea.hbm %s1, %s202
          %s205 = sshll.u32 %s198, 4
          %s206 = int_to_ptr.vmem [resolvable:$true] %s205
          %208 = dma.hbm_to_vmem [thread:$0]  %s203, 128, %s206, %s195
        $region28: #{tpu_custom_call.1} parent=23 // pred_fallthru
          _
        // Predicated region
        $region29: #{tpu_custom_call.1} parent=23 // pred_check
          %p209 = pneg %p122
        $region30: #{tpu_custom_call.1} parent=23 // pred_check_branch
          %211 = sbr.rel (%p209) target = $region32
        $region31: #{tpu_custom_call.1} parent=23 // pred_region
          %p212 = scmp.lt.s32.totalorder %s24, 1
          %s213 = scalar_select %p212, %s24, 1
          %s214 = scalar_lea.vmem %s3, %s213
        $region32: #{tpu_custom_call.1} parent=23 // pred_fallthru
          _
      $region24: #{tpu_custom_call.1} parent=5 // pred_fallthru
        _
      %p215 = scmp.le.s32.totalorder 1, %s17
      %p216 = scmp.lt.s32.totalorder %s17, 3
      %p217 = pnand %p215, %p216
      %p218 = pneg %p217
      // Predicated region
      $region33: #{tpu_custom_call.1} parent=5 // pred_check
        _
      $region34: #{tpu_custom_call.1} parent=5 // pred_check_branch
        %220 = sbr.rel (%p217) target = $region36
      $region35: #{tpu_custom_call.1} parent=5 // pred_region
        %s221 = ssub.s32 %s17, 1
        // Predicated region
        $region37: #{tpu_custom_call.1} parent=35 // pred_check
          %p222 = pneg %p55
        $region38: #{tpu_custom_call.1} parent=35 // pred_check_branch
          %224 = sbr.rel (%p222) target = $region40
        $region39: #{tpu_custom_call.1} parent=35 // pred_region
          %225 = dma.done [#allocation3], 128
        $region40: #{tpu_custom_call.1} parent=35 // pred_fallthru
          _
        %s226 = sand.u32 %s68, 1
        %s227 = scalar_lea.sflag [#allocation6], %s226
        %s228 = sand.u32 %s68, 1
        %s229 = smul.addr %s228, 8
        %s230 = scalar_lea.vmem [#allocation5], %s229
        // Predicated region
        $region41: #{tpu_custom_call.1} parent=35 // pred_check
          %p231 = pneg %p81
        $region42: #{tpu_custom_call.1} parent=35 // pred_check_branch
          %233 = sbr.rel (%p231) target = $region44
        $region43: #{tpu_custom_call.1} parent=35 // pred_region
          %234 = dma.done %s227, 128
        $region44: #{tpu_custom_call.1} parent=35 // pred_fallthru
          _
        %p235 = pneg %p55
        %p236 = pneg %p52
        %s237 = sand.u32 %s68, 1
        %s238 = scalar_lea.sflag [#allocation6], %s237
        %s239 = sand.u32 %s68, 1
        %s240 = smul.addr %s239, 8
        %s241 = scalar_lea.vmem [#allocation5], %s240
        %p242 = pneg %p81
        %p243 = pneg %p78
        %p244 = pneg %p102
        %p245 = pneg %p99
        %p246 = scmp.lt.s32.totalorder %s26, 1
        %s247 = scalar_select %p246, %s26, 1
        %s248 = scalar_lea.vmem %s3, %s247
        %p249 = pneg %p128
        %p250 = pneg %p125
        %p251 = pneg %p156
        %p252 = pneg %p153
        %s253 = sand.u32 %s143, 1
        %s254 = scalar_lea.sflag [#allocation4], %s253
        %s255 = sand.u32 %s143, 1
        %s256 = smul.addr %s255, 8
        %s257 = scalar_lea.vmem [#allocation7], %s256
        %p258 = scmp.lt.s32.totalorder %s26, 1
        %s259 = scalar_select %p258, %s26, 1
        %s260 = scalar_lea.vmem %s3, %s259
        %v261 = vld [vmem:[#allocation2] sm:$0xff]
        %v262 = vld [vmem:[%s2] sm:$0x1]
        %v264 = vlaneseq
        %v265 = vshrl.u32 %v264, 7
        %v266 = vsub.s32 0, %v265
        %v267 = vrot.slane %v262, %v266
        %v269 = vmul.f32 %v261, %v267
        %v270 = vld [vmem:[%s230] sm:$0x3f]
        %v271 = vld [vmem:[%s260] sm:$0x1]
        %v273 = vlaneseq
        %v274 = vshrl.u32 %v273, 7
        %v275 = vsub.s32 0, %v274
        %v276 = vrot.slane %v271, %v275
        %vm278 = vcmask 48128
        %v280 = vsel %vm278, %v269, 0
        %vm282 = vcmask 1045504
        %v284 = vsel %vm282, %v270, 0
        %286 = vmatprep.subr.mxu0 0.0
        %287 = vmatpush1.msra.mxu0 0.0
        %288 = vmatprep.subr.mxu0 0.0
        %289 = vmatpush1.msra.mxu0 0.0
        %290 = vmatprep.subr.mxu0 0.0
        %291 = vmatpush1.msra.mxu0 0.0
        %292 = vmatprep.subr.mxu0 0.0
        %293 = vmatpush1.msra.mxu0 0.0
        %294 = vmatprep.subr.mxu0 0.0
        %295 = vmatpush1.msra.mxu0 0.0
        %296 = vmatprep.subr.mxu0 0.0
        %297 = vmatpush1.msra.mxu0 0.0
        %298 = vmatprep.subr.mxu0 0.0
        %299 = vmatpush1.msra.mxu0 0.0
        %300 = vmatprep.subr.mxu0 0.0
        %301 = vmatpush1.msra.mxu0 0.0
        %302 = vmatprep.subr.mxu0 0.0
        %303 = vmatpush1.msra.mxu0 0.0
        %304 = vmatprep.subr.mxu0 0.0
        %305 = vmatpush1.msra.mxu0 0.0
        %306 = vmatprep.subr.mxu0 0.0
        %307 = vmatpush1.msra.mxu0 0.0
        %308 = vmatprep.subr.mxu0 0.0
        %309 = vmatpush1.msra.mxu0 0.0
        %310 = vmatprep.subr.mxu0 0.0
        %311 = vmatpush1.msra.mxu0 0.0
        %312 = vmatprep.subr.mxu0 0.0
        %313 = vmatpush1.msra.mxu0 0.0
        %314 = vmatprep.subr.mxu0 0.0
        %315 = vmatpush1.msra.mxu0 0.0
        %316 = vmatprep.subr.mxu0 0.0
        %317 = vmatpush1.msra.mxu0 %v284
        %318 = vmatprep.subr.mxu0 0.0
        %319 = vmatpush2.msra.mxu0 0.0
        %320 = vmatprep.subr.mxu0 0.0
        %321 = vmatpush2.msra.mxu0 0.0
        %322 = vmatprep.subr.mxu0 0.0
        %323 = vmatpush2.msra.mxu0 0.0
        %324 = vmatprep.subr.mxu0 0.0
        %325 = vmatpush2.msra.mxu0 0.0
        %326 = vmatprep.subr.mxu0 0.0
        %327 = vmatpush2.msra.mxu0 0.0
        %328 = vmatprep.subr.mxu0 0.0
        %329 = vmatpush2.msra.mxu0 0.0
        %330 = vmatprep.subr.mxu0 0.0
        %331 = vmatpush2.msra.mxu0 0.0
        %332 = vmatprep.subr.mxu0 0.0
        %333 = vmatpush2.msra.mxu0 0.0
        %334 = vmatprep.subr.mxu0 0.0
        %335 = vmatpush2.msra.mxu0 0.0
        %336 = vmatprep.subr.mxu0 0.0
        %337 = vmatpush2.msra.mxu0 0.0
        %338 = vmatprep.subr.mxu0 0.0
        %339 = vmatpush2.msra.mxu0 0.0
        %340 = vmatprep.subr.mxu0 0.0
        %341 = vmatpush2.msra.mxu0 0.0
        %342 = vmatprep.subr.mxu0 0.0
        %343 = vmatpush2.msra.mxu0 0.0
        %344 = vmatprep.subr.mxu0 0.0
        %345 = vmatpush2.msra.mxu0 0.0
        %346 = vmatprep.subr.mxu0 0.0
        %347 = vmatpush2.msra.mxu0 0.0
        %348 = vmatprep.subr.mxu0 0.0
        %349 = vmatpush2.msra.mxu0 0.0
        %350 = vmatprep.mubr.f32.mxu0 0.0
        %351 = vmatmul.mubr.f32.gmra.mxu0 %v280
        %v352 = vpop.f32.mrf.mxu0
        %v353 = vadd.f32 %v276, %v352
        %v354 = vpop.f32.mrf.mxu0
        %355 = vdwg.mxu0
        %356 = vst [vmem:[%s257] sm:$0xff] %v353
        %s357 = sand.u32 %s143, 1
        %s358 = scalar_lea.sflag [#allocation4], %s357
        %s359 = sand.u32 %s143, 1
        %s360 = smul.addr %s359, 8
        %s361 = scalar_lea.vmem [#allocation7], %s360
        // Predicated region
        $region45: #{tpu_custom_call.1} parent=35 // pred_check
          %p362 = pneg %p153
        $region46: #{tpu_custom_call.1} parent=35 // pred_check_branch
          %364 = sbr.rel (%p362) target = $region48
        $region47: #{tpu_custom_call.1} parent=35 // pred_region
          %s366 = ssub.s32 128, 128
          %367 = vsyncadd %s358, %s366
          %s368 = smul.addr %s27, 2
          %s369 = sadd.s32 %s26, %s368
          %s370 = smul.addr %s369, 128
          %s371 = scalar_lea.hbm %s4, %s370
          %s373 = sshll.u32 %s361, 4
          %s374 = int_to_ptr.vmem [resolvable:$true] %s373
          %376 = dma.vmem_to_hbm [thread:$0]  %s374, 128, %s371, %s358
        $region48: #{tpu_custom_call.1} parent=35 // pred_fallthru
          _
      $region36: #{tpu_custom_call.1} parent=5 // pred_fallthru
        _
      %p377 = scmp.le.s32.totalorder 2, %s17
      // Predicated region
      $region49: #{tpu_custom_call.1} parent=5 // pred_check
        %p378 = pneg %p377
      $region50: #{tpu_custom_call.1} parent=5 // pred_check_branch
        %380 = sbr.rel (%p378) target = $region52
      $region51: #{tpu_custom_call.1} parent=5 // pred_region
        %s381 = ssub.s32 %s17, 2
        // Predicated region
        $region53: #{tpu_custom_call.1} parent=51 // pred_check
          %p382 = pneg %p159
        $region54: #{tpu_custom_call.1} parent=51 // pred_check_branch
          %384 = sbr.rel (%p382) target = $region56
        $region55: #{tpu_custom_call.1} parent=51 // pred_region
          %s385 = sand.u32 %s144, 1
          %s386 = scalar_lea.sflag [#allocation4], %s385
          %s387 = sand.u32 %s144, 1
          %s388 = smul.addr %s387, 8
          %s389 = scalar_lea.vmem [#allocation7], %s388
          %390 = dma.done %s386, 128
        $region56: #{tpu_custom_call.1} parent=51 // pred_fallthru
          _
      $region52: #{tpu_custom_call.1} parent=5 // pred_fallthru
        _
    $region6: #{tpu_custom_call.1} parent=1 // loop_footer
      %s21 = sadd.s32 1, %s17
    $region7: #{tpu_custom_call.1} parent=1 // loop_footer_branch
      %16 = sbr.rel target = $region3
    $region8: #{tpu_custom_call.1} parent=1 // loop_exit
      _
    %391 = vsyncpa [#allocation3], 1
    %s392 = scalar_lea.sflag [#allocation3], 1
    %393 = vsyncpa %s392, 1
    %394 = vsyncpa [#allocation6], 1
    %s395 = scalar_lea.sflag [#allocation6], 1
    %396 = vsyncpa %s395, 1
    %397 = vsyncpa [#allocation4], 1
    %s398 = scalar_lea.sflag [#allocation4], 1
    %399 = vsyncpa %s398, 1

</llo_original>
